<compile_context>
chip_gen: v6e
topology: v6e:2x2x1
jax: 0.10.0
libtpu: 0.0.40
codegen_flags: <defaults>
</compile_context>

<pallas_src>
import functools

import jax
import jax.numpy as jnp
from jax import lax
from jax.experimental import pallas as pl
from jax.experimental.pallas import tpu as pltpu


def _round_up(n, m):
    return -(-n // m) * m


def channel_attention_kernel(x_ref, w1_ref, w2_ref, o_ref, acc_ref, *,
                             inv_hw, hw_total, need_mask):
    # x_ref:   (BT, C, HWT)  input block, native NC(HW) layout, source dtype.
    # w1_ref:  (hid, C)      Conv2d(C, hid, 1).weight.reshape(hid, C)   (native)
    # w2_ref:  (C, hid)      Conv2d(hid, C, 1).weight.reshape(C, hid)   (native)
    # o_ref:   (BT, 1, C)    sigmoid(fc(avg) + fc(max)), written on last HW step.
    # acc_ref: (2*BT, C) f32 rows [0:BT) = running sum, rows [BT:2BT) = running max.
    t = pl.program_id(1)
    bt = o_ref.shape[0]

    # Upcast per-vreg only; the VMEM block keeps the (possibly bf16) source dtype.
    x = x_ref[...].astype(jnp.float32)                       # (BT, C, HWT)

    if need_mask:
        # The last HW tile overhangs the true spatial extent: neutralize the
        # padded lanes (0 for the sum, -inf for the max).
        lane = lax.broadcasted_iota(jnp.int32, x.shape, 2) + t * x.shape[-1]
        valid = lane < hw_total
        part_sum = jnp.sum(jnp.where(valid, x, 0.0), axis=-1)         # (BT, C)
        part_max = jnp.max(jnp.where(valid, x, -jnp.inf), axis=-1)    # (BT, C)
    else:
        part_sum = jnp.sum(x, axis=-1)                                # (BT, C)
        part_max = jnp.max(x, axis=-1)                                # (BT, C)

    @pl.when(t == 0)
    def _init():
        acc_ref[0:bt, :] = part_sum
        acc_ref[bt:2 * bt, :] = part_max

    @pl.when(t > 0)
    def _accumulate():
        acc_ref[0:bt, :] = acc_ref[0:bt, :] + part_sum
        acc_ref[bt:2 * bt, :] = jnp.maximum(acc_ref[bt:2 * bt, :], part_max)

    @pl.when(t == pl.num_programs(1) - 1)
    def _finalize():
        acc_ref[0:bt, :] = acc_ref[0:bt, :] * inv_hw       # running sum -> mean
        pooled = acc_ref[...]                              # (2*BT, C): [avg; max]

        # Shared MLP with weights in native (out, in) layout:
        #   h   = relu(pooled @ w1^T)   -> (2*BT, hid)
        #   out = h @ w2^T              -> (2*BT, C)
        nt = (((1,), (1,)), ((), ()))                      # contract C with C
        h = lax.dot_general(pooled, w1_ref[...], nt,
                            preferred_element_type=jnp.float32)
        h = jnp.maximum(h, 0.0)
        out = lax.dot_general(h, w2_ref[...], nt,
                              preferred_element_type=jnp.float32)

        s = out[0:bt, :] + out[bt:2 * bt, :]               # fc(avg) + fc(max)
        o_ref[:, 0, :] = jax.nn.sigmoid(s).astype(o_ref.dtype)


def _pick_hw_tile(hw, c, itemsize, budget_bytes):
    """Pick the HW (lane-axis) tile.  Returns (hw_tile, need_mask)."""
    if hw <= 128 or c * hw * itemsize <= budget_bytes:
        # Whole spatial extent in one block; always legal because the block dim
        # equals the full array dim (covers HW < 128 and non-128-multiples).
        return hw, False
    # Tile HW in multiples of 128; the partial last tile gets lane-masked.
    max_lanes = max((budget_bytes // (c * itemsize)) // 128 * 128, 128)
    hw_tile = min(_round_up(hw, 128), max_lanes)
    return hw_tile, (hw % hw_tile) != 0


def _pick_b_tile(batch, c, hw_tile, itemsize, budget_bytes):
    """Largest divisor of batch that keeps >=2 batch grid steps (so the
    'parallel' axis can shard across both v7x TensorCores) and fits the budget."""
    if batch == 1:
        return 1
    best = 1
    for d in range(2, batch // 2 + 1):
        if batch % d == 0 and d * c * hw_tile * itemsize <= budget_bytes:
            best = d
    return best


def channel_attention(x_nchw, w_fc1, w_fc2, *, block_budget_bytes=8 * 1024 * 1024):
    """x_nchw: (B, C, H, W) float32 or bfloat16
       w_fc1:  (C//16, C, 1, 1)  -- Conv2d(C, C//16, 1, bias=False).weight
       w_fc2:  (C, C//16, 1, 1)  -- Conv2d(C//16, C, 1, bias=False).weight
       returns (B, C, 1, 1) in x's dtype, matching the PyTorch module output.
    """
    B, C, H, W = x_nchw.shape
    HW = H * W
    hid = w_fc1.shape[0]
    in_dtype = x_nchw.dtype
    itemsize = jnp.dtype(in_dtype).itemsize

    # Native layouts only (free reshapes of contiguous arrays); no transposes.
    x = x_nchw.reshape(B, C, HW)
    w1 = w_fc1.reshape(hid, C).astype(jnp.float32)
    w2 = w_fc2.reshape(C, hid).astype(jnp.float32)

    hw_tile, need_mask = _pick_hw_tile(HW, C, itemsize, block_budget_bytes)
    b_tile = _pick_b_tile(B, C, hw_tile, itemsize, block_budget_bytes)
    num_hw_steps = -(-HW // hw_tile)
    grid = (B // b_tile, num_hw_steps)      # b_tile divides B by construction

    # Explicit scoped-VMEM limit sized from the actual double-buffered x block
    # (+ headroom for weights / output / scratch / compiler internals).  Keeps
    # larger budgets safe on v5e (16 MiB default) and inside v7x's 64 MiB VMEM.
    sublane = 8 * max(4 // itemsize, 1)
    x_block_bytes = (b_tile * _round_up(C, sublane)
                     * _round_up(hw_tile, 128) * itemsize)
    vmem_limit_bytes = min(max(2 * x_block_bytes + (4 << 20), 8 << 20), 64 << 20)

    cost = pl.CostEstimate(
        flops=2 * B * C * HW + 8 * B * C * hid,
        transcendentals=B * C,
        bytes_accessed=B * C * HW * itemsize + 2 * C * hid * 4 + B * C * itemsize,
    )

    kernel = functools.partial(channel_attention_kernel,
                               inv_hw=1.0 / HW, hw_total=HW, need_mask=need_mask)

    out = pl.pallas_call(
        kernel,
        out_shape=jax.ShapeDtypeStruct((B, 1, C), in_dtype),
        grid_spec=pltpu.PrefetchScalarGridSpec(
            num_scalar_prefetch=0,
            grid=grid,
            in_specs=[
                pl.BlockSpec((b_tile, C, hw_tile), lambda b, t: (b, 0, t)),
                pl.BlockSpec((hid, C), lambda b, t: (0, 0)),
                pl.BlockSpec((C, hid), lambda b, t: (0, 0)),
            ],
            out_specs=pl.BlockSpec((b_tile, 1, C), lambda b, t: (b, 0, 0)),
            scratch_shapes=[
                pltpu.VMEM((2 * b_tile, C), jnp.float32),   # [running sum; running max]
            ],
        ),
        compiler_params=pltpu.CompilerParams(
            dimension_semantics=("parallel", "arbitrary"),
            vmem_limit_bytes=vmem_limit_bytes),
        cost_estimate=cost,
    )(x, w1, w2)

    return out.reshape(B, C, 1, 1)           # (B,1,C) -> (B,C,1,1) is free


def reference(x_nchw, w_fc1, w_fc2):
    B, C, H, W = x_nchw.shape
    hidden = w_fc1.shape[0]
    w1 = w_fc1.reshape(hidden, C).astype(jnp.float32)
    w2 = w_fc2.reshape(C, hidden).astype(jnp.float32)

    def fc(p):  # p: (B, C)
        h = jnp.maximum(p @ w1.T, 0.0)
        return h @ w2.T

    xf = x_nchw.astype(jnp.float32)
    avg = jnp.mean(xf, axis=(2, 3))
    mx = jnp.max(xf, axis=(2, 3))
    return jax.nn.sigmoid(fc(avg) + fc(mx)).reshape(B, C, 1, 1)


if __name__ == "__main__":
    # Module: ChannelAttention(in_planes=32)  (fc hard-codes //16 -> hidden=2)
    B, C, H, W = 2, 32, 16, 16
    hidden = C // 16

    key = jax.random.PRNGKey(0)
    kx, k1, k2, kx2, kx3, kx4 = jax.random.split(key, 6)

    w_fc1 = 0.1 * jax.random.normal(k1, (hidden, C, 1, 1), dtype=jnp.float32)
    w_fc2 = 0.1 * jax.random.normal(k2, (C, hidden, 1, 1), dtype=jnp.float32)

    # 1) Small f32 input: single HW block, batch axis has 2 parallel steps.
    x = jax.random.normal(kx, (B, C, H, W), dtype=jnp.float32)
    out = jax.block_until_ready(channel_attention(x, w_fc1, w_fc2))
    ref = reference(x, w_fc1, w_fc2)
    assert out.shape == (B, C, 1, 1)
    assert jnp.allclose(out, ref, atol=1e-5, rtol=1e-5), "mismatch (full-HW path)"

    # 2) Non-128-multiple spatial size that must be tiled (tiny budget):
    #    HW=900, hw_tile=512 -> 2 HW steps, last tile lane-masked.
    x2 = jax.random.normal(kx2, (B, C, 30, 30), dtype=jnp.float32)
    out2 = jax.block_until_ready(
        channel_attention(x2, w_fc1, w_fc2, block_budget_bytes=64 * 1024))
    ref2 = reference(x2, w_fc1, w_fc2)
    assert jnp.allclose(out2, ref2, atol=1e-5, rtol=1e-5), "mismatch (masked tiled path)"

    # 3) Tiny spatial size (7x7 = 49 < 128): full-extent block, no mask.
    x3 = jax.random.normal(kx3, (B, C, 7, 7), dtype=jnp.float32)
    out3 = jax.block_until_ready(channel_attention(x3, w_fc1, w_fc2))
    ref3 = reference(x3, w_fc1, w_fc2)
    assert jnp.allclose(out3, ref3, atol=1e-5, rtol=1e-5), "mismatch (small-HW path)"

    # 4) bf16 input fast path (half the HBM bytes; f32 accumulation inside).
    x4 = jax.random.normal(kx4, (B, C, H, W), dtype=jnp.float32).astype(jnp.bfloat16)
    out4 = jax.block_until_ready(channel_attention(x4, w_fc1, w_fc2))
    ref4 = reference(x4, w_fc1, w_fc2)
    assert out4.dtype == jnp.bfloat16
    assert jnp.allclose(out4.astype(jnp.float32), ref4, atol=1e-2), "mismatch (bf16 path)"

    # 5) Larger batch with tiny HW: b_tile>1 while keeping >=2 parallel batch steps.
    x5 = jax.random.normal(kx, (8, C, 4, 4), dtype=jnp.float32)
    out5 = jax.block_until_ready(channel_attention(x5, w_fc1, w_fc2))
    ref5 = reference(x5, w_fc1, w_fc2)
    assert jnp.allclose(out5, ref5, atol=1e-5, rtol=1e-5), "mismatch (batched-tile path)"

    print("KERNEL_OK")
</pallas_src>

<mosaic_0001>
module attributes {stable_mosaic.version = 11 : i64} {
  func.func @channel_attention_kernel(%arg0: i32, %arg1: i32, %arg2: memref<1x32x256xf32, #tpu.memory_space<vmem>>, %arg3: memref<2x32xf32, #tpu.memory_space<vmem>>, %arg4: memref<32x2xf32, #tpu.memory_space<vmem>>, %arg5: memref<1x1x32xf32, #tpu.memory_space<vmem>>, %arg6: memref<2x32xf32, #tpu.memory_space<vmem>>) attributes {dimension_semantics = [#tpu.dimension_semantics<parallel>, #tpu.dimension_semantics<arbitrary>], iteration_bounds = array<i64: 2, 1>, scalar_prefetch = 0 : i64, scratch_operands = 1 : i64, tpu.core_type = #tpu.core_type<tc>, window_params = [{transform_indices = @transform_0, window_bounds = array<i64: 1, 32, 256>}, {pipeline_mode = #tpu.pipeline_mode<synchronous>, transform_indices = @transform_1, window_bounds = array<i64: 2, 32>}, {pipeline_mode = #tpu.pipeline_mode<synchronous>, transform_indices = @transform_2, window_bounds = array<i64: 32, 2>}, {transform_indices = @transform_3, window_bounds = array<i64: 1, 1, 32>}]} {
    %c0 = arith.constant 0 : index
    %c0_0 = arith.constant 0 : index
    %c0_1 = arith.constant 0 : index
    %0 = vector.load %arg2[%c0, %c0_0, %c0_1] : memref<1x32x256xf32, #tpu.memory_space<vmem>>, vector<1x32x256xf32>
    %cst = arith.constant dense<0.000000e+00> : vector<1x32xf32>
    %1 = vector.multi_reduction <add>, %0, %cst [2] : vector<1x32x256xf32> to vector<1x32xf32>
    %cst_2 = arith.constant dense<0xFF800000> : vector<1x32xf32>
    %2 = vector.multi_reduction <maximumf>, %0, %cst_2 [2] : vector<1x32x256xf32> to vector<1x32xf32>
    %c0_i32 = arith.constant 0 : i32
    %3 = arith.cmpi eq, %arg1, %c0_i32 : i32
    %4 = arith.extui %3 : i1 to i32
    %c0_i32_3 = arith.constant 0 : i32
    %5 = arith.cmpi ne, %4, %c0_i32_3 : i32
    scf.if %5 {
      %c0_8 = arith.constant 0 : index
      %c0_9 = arith.constant 0 : index
      %12 = vector.load %arg6[%c0_8, %c0_9] : memref<2x32xf32, #tpu.memory_space<vmem>>, vector<1x32xf32>
      tpu.vector_store %arg6[%c0_8, %c0_9], %1 {strides = array<i32>} : memref<2x32xf32, #tpu.memory_space<vmem>>, vector<1x32xf32>,
      %c1 = arith.constant 1 : index
      %c0_10 = arith.constant 0 : index
      %13 = vector.load %arg6[%c1, %c0_10] : memref<2x32xf32, #tpu.memory_space<vmem>>, vector<1x32xf32>
      tpu.vector_store %arg6[%c1, %c0_10], %2 {strides = array<i32>} : memref<2x32xf32, #tpu.memory_space<vmem>>, vector<1x32xf32>,
    } else {
    }
    %c0_i32_4 = arith.constant 0 : i32
    %6 = arith.cmpi sgt, %arg1, %c0_i32_4 : i32
    %7 = arith.extui %6 : i1 to i32
    %c0_i32_5 = arith.constant 0 : i32
    %8 = arith.cmpi ne, %7, %c0_i32_5 : i32
    scf.if %8 {
      %c0_8 = arith.constant 0 : index
      %c0_9 = arith.constant 0 : index
      %12 = vector.load %arg6[%c0_8, %c0_9] : memref<2x32xf32, #tpu.memory_space<vmem>>, vector<1x32xf32>
      %13 = arith.addf %12, %1 : vector<1x32xf32>
      %c0_10 = arith.constant 0 : index
      %c0_11 = arith.constant 0 : index
      %14 = vector.load %arg6[%c0_10, %c0_11] : memref<2x32xf32, #tpu.memory_space<vmem>>, vector<1x32xf32>
      tpu.vector_store %arg6[%c0_10, %c0_11], %13 {strides = array<i32>} : memref<2x32xf32, #tpu.memory_space<vmem>>, vector<1x32xf32>,
      %c1 = arith.constant 1 : index
      %c0_12 = arith.constant 0 : index
      %15 = vector.load %arg6[%c1, %c0_12] : memref<2x32xf32, #tpu.memory_space<vmem>>, vector<1x32xf32>
      %16 = arith.maximumf %15, %2 : vector<1x32xf32>
      %c1_13 = arith.constant 1 : index
      %c0_14 = arith.constant 0 : index
      %17 = vector.load %arg6[%c1_13, %c0_14] : memref<2x32xf32, #tpu.memory_space<vmem>>, vector<1x32xf32>
      tpu.vector_store %arg6[%c1_13, %c0_14], %16 {strides = array<i32>} : memref<2x32xf32, #tpu.memory_space<vmem>>, vector<1x32xf32>,
    } else {
    }
    %c0_i32_6 = arith.constant 0 : i32
    %9 = arith.cmpi eq, %arg1, %c0_i32_6 : i32
    %10 = arith.extui %9 : i1 to i32
    %c0_i32_7 = arith.constant 0 : i32
    %11 = arith.cmpi ne, %10, %c0_i32_7 : i32
    scf.if %11 {
      %c0_8 = arith.constant 0 : index
      %c0_9 = arith.constant 0 : index
      %12 = vector.load %arg6[%c0_8, %c0_9] : memref<2x32xf32, #tpu.memory_space<vmem>>, vector<1x32xf32>
      %cst_10 = arith.constant 3.906250e-03 : f32
      %13 = vector.broadcast %cst_10 : f32 to vector<1x32xf32>
      %14 = arith.mulf %12, %13 : vector<1x32xf32>
      %c0_11 = arith.constant 0 : index
      %c0_12 = arith.constant 0 : index
      %15 = vector.load %arg6[%c0_11, %c0_12] : memref<2x32xf32, #tpu.memory_space<vmem>>, vector<1x32xf32>
      tpu.vector_store %arg6[%c0_11, %c0_12], %14 {strides = array<i32>} : memref<2x32xf32, #tpu.memory_space<vmem>>, vector<1x32xf32>,
      %c0_13 = arith.constant 0 : index
      %c0_14 = arith.constant 0 : index
      %16 = vector.load %arg6[%c0_13, %c0_14] : memref<2x32xf32, #tpu.memory_space<vmem>>, vector<2x32xf32>
      %c0_15 = arith.constant 0 : index
      %c0_16 = arith.constant 0 : index
      %17 = vector.load %arg3[%c0_15, %c0_16] : memref<2x32xf32, #tpu.memory_space<vmem>>, vector<2x32xf32>
      %cst_17 = arith.constant dense<0.000000e+00> : vector<2x2xf32>
      %18 = tpu.matmul %16, %17, %cst_17 {dimension_numbers = #tpu.dot_dimension_numbers<[1], [1], [0], [0], [0, 0, 1, 0], [], []>} : vector<2x32xf32>, vector<2x32xf32>, vector<2x2xf32> -> vector<2x2xf32>
      %cst_18 = arith.constant 0.000000e+00 : f32
      %19 = vector.broadcast %cst_18 : f32 to vector<2x2xf32>
      %20 = arith.maximumf %18, %19 : vector<2x2xf32>
      %c0_19 = arith.constant 0 : index
      %c0_20 = arith.constant 0 : index
      %21 = vector.load %arg4[%c0_19, %c0_20] : memref<32x2xf32, #tpu.memory_space<vmem>>, vector<32x2xf32>
      %cst_21 = arith.constant dense<0.000000e+00> : vector<2x32xf32>
      %22 = tpu.matmul %20, %21, %cst_21 {dimension_numbers = #tpu.dot_dimension_numbers<[1], [1], [0], [0], [0, 0, 1, 0], [], []>} : vector<2x2xf32>, vector<32x2xf32>, vector<2x32xf32> -> vector<2x32xf32>
      %23 = vector.extract_strided_slice %22 {offsets = [0, 0], sizes = [1, 32], strides = [1, 1]} : vector<2x32xf32> to vector<1x32xf32>
      %24 = vector.extract_strided_slice %22 {offsets = [1, 0], sizes = [1, 32], strides = [1, 1]} : vector<2x32xf32> to vector<1x32xf32>
      %25 = arith.addf %23, %24 : vector<1x32xf32>
      %26 = arith.negf %25 : vector<1x32xf32>
      %27 = math.exp %26 : vector<1x32xf32>
      %cst_22 = arith.constant 1.000000e+00 : f32
      %28 = vector.broadcast %cst_22 : f32 to vector<1x32xf32>
      %29 = arith.addf %28, %27 : vector<1x32xf32>
      %30 = arith.divf %28, %29 : vector<1x32xf32>
      %c0_23 = arith.constant 0 : index
      %c0_24 = arith.constant 0 : index
      %c0_25 = arith.constant 0 : index
      %31 = vector.load %arg5[%c0_23, %c0_24, %c0_25] : memref<1x1x32xf32, #tpu.memory_space<vmem>>, vector<1x1x32xf32>
      %32 = vector.shape_cast %31 : vector<1x1x32xf32> to vector<1x32xf32>
      %33 = vector.shape_cast %30 : vector<1x32xf32> to vector<1x1x32xf32>
      tpu.vector_store %arg5[%c0_23, %c0_24, %c0_25], %33 {strides = array<i32>} : memref<1x1x32xf32, #tpu.memory_space<vmem>>, vector<1x1x32xf32>,
    } else {
    }
    return
  }
  func.func @transform_0(%arg0: i32, %arg1: i32) -> (i32, i32, i32) {
    %c0_i32 = arith.constant 0 : i32
    %c0_i32_0 = arith.constant 0 : i32
    return %arg0, %c0_i32, %arg1 : i32, i32, i32
  }
  func.func @transform_1(%arg0: i32, %arg1: i32) -> (i32, i32) {
    %c0_i32 = arith.constant 0 : i32
    %c0_i32_0 = arith.constant 0 : i32
    %c0_i32_1 = arith.constant 0 : i32
    return %c0_i32, %c0_i32_0 : i32, i32
  }
  func.func @transform_2(%arg0: i32, %arg1: i32) -> (i32, i32) {
    %c0_i32 = arith.constant 0 : i32
    %c0_i32_0 = arith.constant 0 : i32
    %c0_i32_1 = arith.constant 0 : i32
    return %c0_i32, %c0_i32_0 : i32, i32
  }
  func.func @transform_3(%arg0: i32, %arg1: i32) -> (i32, i32, i32) {
    %c0_i32 = arith.constant 0 : i32
    %c0_i32_0 = arith.constant 0 : i32
    %c0_i32_1 = arith.constant 0 : i32
    return %arg0, %c0_i32, %c0_i32_0 : i32, i32, i32
  }
}

</mosaic_0001>

<llo_original>
// kernel: tpu_custom_call.1
$region0: #{tpu_custom_call.1}
  #allocation0 [shape = 'u32[]', space=smem, size = 0x4, offset = 0x4, fixed_abs, tag = 'smem constant byte address 0x4 - core index']
  #allocation1 [shape = 'u32[144,128]{1,0:T(1,128)}', space=vmem, size = 0x12000, scoped, tag = 'internal scratch']
  #allocation2 [shape = 'f32[2,32]{1,0:T(2,128)}', space=vmem, size = 0x400, scoped, tag = 'scratch operand']
  %s0 = inlined_call_operand.hbm [shape: f32[2,32,256], index: 0, kind: input, shape index: {}]
  %s1 = inlined_call_operand.vmem [shape: f32[2,32], index: 1, kind: input, shape index: {}]
  %s2 = inlined_call_operand.vmem [shape: f32[32,2], index: 2, kind: input, shape index: {}]
  %s3 = inlined_call_operand.hbm [shape: f32[2,1,32], index: 3, kind: output, shape index: {}]
  %s4 = sld [smem:[#allocation0]]
  $region61: #{tpu_custom_call.1} parent=0
    _
  %s6 = ssub.s32 1, %s4
  %s7 = scalar_select 0, %s6, %s4
  $region1: #{tpu_custom_call.1} parent=0
    #allocation3 [shape = 'u8[65536]{0}', space=vmem, size = 0x10000, scoped, tag = 'input window, operand 0']
    #allocation4 [shape = 's32[2]{0}', space=sflag, size = 0x8, scoped, tag = 'scoped memory for tpu_custom_call.1']
    #allocation5 [shape = 's32[2]{0}', space=sflag, size = 0x8, scoped, tag = 'scoped memory for tpu_custom_call.1']
    #allocation6 [shape = 'u8[1024]{0}', space=vmem, size = 0x400, scoped, tag = 'output window, operand 0']
    %8 = vsyncpa [#allocation4], 0
    %s9 = scalar_lea.sflag [#allocation4], 1
    %10 = vsyncpa %s9, 0
    %11 = vsyncpa [#allocation5], 0
    %s12 = scalar_lea.sflag [#allocation5], 1
    %13 = vsyncpa %s12, 0
    loop: start=0, step=1, limit=4
    $region2: #{tpu_custom_call.1} parent=1 // loop_pre_header
      _
    $region3: #{tpu_custom_call.1} parent=1 // loop_header
      %s15 = sphi 0, %s19
      %p16 = scmp.ge.s32.totalorder %s15, 4
      %s22 = sphi 0, %s34
      %s23 = sphi 0, %s30
      %s24 = sphi 0, %s22
      %s25 = sphi 0, %s23
      %s26 = sphi 0, %s24
      %s27 = sphi 0, %s25
      %s39 = sphi 0, %s41
      %s42 = sphi 0, %s39
      %s43 = sphi 0, %s42
      %s59 = sphi 0, %s43
      %s63 = sphi 0, %s63
      %s65 = sphi 0, %s63
      %s66 = sphi 0, %s65
      %s80 = sphi 0, %s66
      %s84 = sphi 0, %s84
      %s86 = sphi 0, %s84
      %s87 = sphi 0, %s86
      %s101 = sphi 0, %s87
      %s107 = sphi 0, %s109
      %s110 = sphi 0, %s107
      %s111 = sphi 0, %s110
      %s127 = sphi 0, %s111
    $region4: #{tpu_custom_call.1} parent=1 // loop_header_branch
      %18 = sbr.rel (%p16) target = $region8
    $region5: #{tpu_custom_call.1} parent=1 // loop_body
      %s20 = ssub.s32 %s15, 1
      %s21 = ssub.s32 %s15, 2
      %s28 = sadd.s32 1, %s23
      %p29 = scmp.ge.s32.totalorder %s28, 1
      %s30 = scalar_select %p29, 0, %s28
      %s31 = sadd.s32 1, %s22
      %s32 = scalar_select %p29, %s31, %s22
      %p33 = scmp.ge.s32.totalorder %s32, 2
      %s34 = scalar_select %p33, 0, %s32
      %s35 = ssub.s32 %s22, %s34
      %s36 = ssub.s32 %s23, %s30
      %s37 = sor.u32 %s35, %s36
      %p38 = scmp.eq.s32.totalorder %s37, 0
      %s40 = sadd.s32 %s39, 1
      %s41 = scalar_select %p38, %s39, %s40
      %p44 = pneg %p38
      %p45 = scmp.eq.s32.totalorder %s15, 1
      %p46 = por %p44, %p45
      %p47 = scmp.ne.s32.totalorder %s39, %s42
      %p48 = scmp.eq.s32.totalorder %s15, 0
      %p49 = por %p47, %p48
      %p50 = scmp.ne.s32.totalorder %s39, %s42
      %p51 = scmp.eq.s32.totalorder %s20, 1
      %p52 = por %p50, %p51
      %p53 = scmp.ne.s32.totalorder %s42, %s43
      %p54 = scmp.eq.s32.totalorder %s20, 0
      %p55 = por %p53, %p54
      %p56 = scmp.ne.s32.totalorder %s42, %s43
      %p57 = scmp.eq.s32.totalorder %s21, 1
      %p58 = por %p56, %p57
      %p60 = scmp.ne.s32.totalorder %s43, %s59
      %p61 = scmp.eq.s32.totalorder %s21, 0
      %p62 = por %p60, %p61
      %s64 = sadd.s32 %s63, 1
      %p67 = scmp.eq.s32.totalorder %s15, 1
      %p68 = scmp.ne.s32.totalorder %s63, %s65
      %p69 = scmp.eq.s32.totalorder %s15, 0
      %p70 = por %p68, %p69
      %p71 = scmp.ne.s32.totalorder %s63, %s65
      %p72 = scmp.eq.s32.totalorder %s20, 1
      %p73 = por %p71, %p72
      %p74 = scmp.ne.s32.totalorder %s65, %s66
      %p75 = scmp.eq.s32.totalorder %s20, 0
      %p76 = por %p74, %p75
      %p77 = scmp.ne.s32.totalorder %s65, %s66
      %p78 = scmp.eq.s32.totalorder %s21, 1
      %p79 = por %p77, %p78
      %p81 = scmp.ne.s32.totalorder %s66, %s80
      %p82 = scmp.eq.s32.totalorder %s21, 0
      %p83 = por %p81, %p82
      %s85 = sadd.s32 %s84, 1
      %p88 = scmp.eq.s32.totalorder %s15, 1
      %p89 = scmp.ne.s32.totalorder %s84, %s86
      %p90 = scmp.eq.s32.totalorder %s15, 0
      %p91 = por %p89, %p90
      %p92 = scmp.ne.s32.totalorder %s84, %s86
      %p93 = scmp.eq.s32.totalorder %s20, 1
      %p94 = por %p92, %p93
      %p95 = scmp.ne.s32.totalorder %s86, %s87
      %p96 = scmp.eq.s32.totalorder %s20, 0
      %p97 = por %p95, %p96
      %p98 = scmp.ne.s32.totalorder %s86, %s87
      %p99 = scmp.eq.s32.totalorder %s21, 1
      %p100 = por %p98, %p99
      %p102 = scmp.ne.s32.totalorder %s87, %s101
      %p103 = scmp.eq.s32.totalorder %s21, 0
      %p104 = por %p102, %p103
      %s105 = ssub.s32 %s22, %s34
      %p106 = scmp.eq.s32.totalorder %s105, 0
      %s108 = sadd.s32 %s107, 1
      %s109 = scalar_select %p106, %s107, %s108
      %p112 = pneg %p106
      %p113 = scmp.eq.s32.totalorder %s15, 1
      %p114 = por %p112, %p113
      %p115 = scmp.ne.s32.totalorder %s107, %s110
      %p116 = scmp.eq.s32.totalorder %s15, 0
      %p117 = por %p115, %p116
      %p118 = scmp.ne.s32.totalorder %s107, %s110
      %p119 = scmp.eq.s32.totalorder %s20, 1
      %p120 = por %p118, %p119
      %p121 = scmp.ne.s32.totalorder %s110, %s111
      %p122 = scmp.eq.s32.totalorder %s20, 0
      %p123 = por %p121, %p122
      %p124 = scmp.ne.s32.totalorder %s110, %s111
      %p125 = scmp.eq.s32.totalorder %s21, 1
      %p126 = por %p124, %p125
      %p128 = scmp.ne.s32.totalorder %s111, %s127
      %p129 = scmp.eq.s32.totalorder %s21, 0
      %p130 = por %p128, %p129
      %p131 = scmp.le.s32.totalorder 1, %s15
      %p132 = scmp.lt.s32.totalorder %s15, 3
      %p133 = pnand %p131, %p132
      %p134 = pneg %p133
      // Predicated region
      $region9: #{tpu_custom_call.1} parent=5 // pred_check
        _
      $region10: #{tpu_custom_call.1} parent=5 // pred_check_branch
        %136 = sbr.rel (%p133) target = $region12
      $region11: #{tpu_custom_call.1} parent=5 // pred_region
        %s137 = ssub.s32 %s15, 1
        // Predicated region
        $region13: #{tpu_custom_call.1} parent=11 // pred_check
          %p138 = pneg %p76
        $region14: #{tpu_custom_call.1} parent=11 // pred_check_branch
          %140 = sbr.rel (%p138) target = $region16
        $region15: #{tpu_custom_call.1} parent=11 // pred_region
          _
        $region16: #{tpu_custom_call.1} parent=11 // pred_fallthru
          _
        // Predicated region
        $region17: #{tpu_custom_call.1} parent=11 // pred_check
          %p141 = pneg %p97
        $region18: #{tpu_custom_call.1} parent=11 // pred_check_branch
          %143 = sbr.rel (%p141) target = $region20
        $region19: #{tpu_custom_call.1} parent=11 // pred_region
          _
        $region20: #{tpu_custom_call.1} parent=11 // pred_fallthru
          _
      $region12: #{tpu_custom_call.1} parent=5 // pred_fallthru
        _
      %p144 = scmp.lt.s32.totalorder %s15, 2
      // Predicated region
      $region21: #{tpu_custom_call.1} parent=5 // pred_check
        %p145 = pneg %p144
      $region22: #{tpu_custom_call.1} parent=5 // pred_check_branch
        %147 = sbr.rel (%p145) target = $region24
      $region23: #{tpu_custom_call.1} parent=5 // pred_region
        // Predicated region
        $region25: #{tpu_custom_call.1} parent=23 // pred_check
          %p148 = pneg %p49
        $region26: #{tpu_custom_call.1} parent=23 // pred_check_branch
          %150 = sbr.rel (%p148) target = $region28
        $region27: #{tpu_custom_call.1} parent=23 // pred_region
          %s151 = sand.u32 %s39, 1
          %s152 = scalar_lea.sflag [#allocation4], %s151
          %s153 = sand.u32 %s39, 1
          %s154 = smul.addr %s153, 64
          %s155 = scalar_lea.vmem [#allocation3], %s154
          %s156 = smul.u32 2, %s23
          %s158 = ssub.s32 1024, 1024
          %159 = vsyncadd %s152, %s158
          %s160 = smul.addr %s22, 8
          %s161 = sadd.s32 %s156, %s160
          %s162 = smul.addr %s161, 128
          %s163 = scalar_lea.hbm %s0, %s162
          %s164 = sshll.u32 %s155, 4
          %s165 = int_to_ptr.vmem [resolvable:$true] %s164
          %170 = dma.hbm_to_vmem [thread:$0]  %s163, 1024, %s165, %s152, 256, 256, 16
        $region28: #{tpu_custom_call.1} parent=23 // pred_fallthru
          _
      $region24: #{tpu_custom_call.1} parent=5 // pred_fallthru
        _
      %p171 = scmp.le.s32.totalorder 1, %s15
      %p172 = scmp.lt.s32.totalorder %s15, 3
      %p173 = pnand %p171, %p172
      %p174 = pneg %p173
      // Predicated region
      $region29: #{tpu_custom_call.1} parent=5 // pred_check
        _
      $region30: #{tpu_custom_call.1} parent=5 // pred_check_branch
        %176 = sbr.rel (%p173) target = $region32
      $region31: #{tpu_custom_call.1} parent=5 // pred_region
        %s177 = ssub.s32 %s15, 1
        %s178 = sand.u32 %s42, 1
        %s179 = scalar_lea.sflag [#allocation4], %s178
        %s180 = sand.u32 %s42, 1
        %s181 = smul.addr %s180, 64
        %s182 = scalar_lea.vmem [#allocation3], %s181
        // Predicated region
        $region33: #{tpu_custom_call.1} parent=31 // pred_check
          %p183 = pneg %p55
        $region34: #{tpu_custom_call.1} parent=31 // pred_check_branch
          %185 = sbr.rel (%p183) target = $region36
        $region35: #{tpu_custom_call.1} parent=31 // pred_region
          %186 = dma.done %s179, 1024
        $region36: #{tpu_custom_call.1} parent=31 // pred_fallthru
          _
        %s187 = sand.u32 %s42, 1
        %s188 = scalar_lea.sflag [#allocation4], %s187
        %s189 = sand.u32 %s42, 1
        %s190 = smul.addr %s189, 64
        %s191 = scalar_lea.vmem [#allocation3], %s190
        %p192 = pneg %p55
        %p193 = pneg %p52
        %p194 = pneg %p76
        %p195 = pneg %p73
        %p196 = pneg %p97
        %p197 = pneg %p94
        %p198 = pneg %p123
        %p199 = pneg %p120
        %s200 = sand.u32 %s110, 1
        %s201 = scalar_lea.sflag [#allocation5], %s200
        %s202 = sand.u32 %s110, 1
        %s203 = scalar_lea.vmem [#allocation6], %s202
        %s204 = smul.u32 2, %s25
        %v205 = vld [vmem:[%s182] sm:$0xff]
        %v206 = vld [vmem:[%s182 + $0x8] sm:$0xff]
        %v207 = vld [vmem:[%s182 + $0x10] sm:$0xff]
        %v208 = vld [vmem:[%s182 + $0x18] sm:$0xff]
        %v209 = vld [vmem:[%s182 + $0x20] sm:$0xff]
        %v210 = vld [vmem:[%s182 + $0x28] sm:$0xff]
        %v211 = vld [vmem:[%s182 + $0x30] sm:$0xff]
        %v212 = vld [vmem:[%s182 + $0x38] sm:$0xff]
        %v213 = vadd.f32 %v205, %v206
        %214 = vadd.xlane.f32.xlu0 %v213
        %v215 = vpop.xlane.xlu0 %214
        %v216 = vadd.f32 %v207, %v208
        %217 = vadd.xlane.f32.xlu0 %v216
        %v218 = vpop.xlane.xlu0 %217
        %v219 = vadd.f32 %v209, %v210
        %220 = vadd.xlane.f32.xlu0 %v219
        %v221 = vpop.xlane.xlu0 %220
        %v222 = vadd.f32 %v211, %v212
        %223 = vadd.xlane.f32.xlu0 %v222
        %v224 = vpop.xlane.xlu0 %223
        %v225 = vmax.f32 %v205, %v206
        %226 = vmax.xlane.f32.xlu0 %v225
        %v227 = vpop.xlane.xlu0 %226
        %v228 = vmax.f32 %v207, %v208
        %229 = vmax.xlane.f32.xlu0 %v228
        %v230 = vpop.xlane.xlu0 %229
        %v231 = vmax.f32 %v209, %v210
        %232 = vmax.xlane.f32.xlu0 %v231
        %v233 = vpop.xlane.xlu0 %232
        %v234 = vmax.f32 %v211, %v212
        %235 = vmax.xlane.f32.xlu0 %v234
        %v236 = vpop.xlane.xlu0 %235
        %p237 = scmp.eq.s32.totalorder %s25, 0
        // Predicated region
        $region37: #{tpu_custom_call.1} parent=31 // pred_check
          %p238 = pneg %p237
        $region38: #{tpu_custom_call.1} parent=31 // pred_check_branch
          %240 = sbr.rel (%p238) target = $region40
        $region39: #{tpu_custom_call.1} parent=31 // pred_region
          %v245 = vlaneseq
          %v246 = vand.u32 %v245, 127
          %v247 = vlaneseq
          %v248 = vshrl.u32 %v247, 7
          %v249 = vsub.s32 %v246, %v248
          %v250 = vrot.slane %v215, %v249
          %v251 = vadd.s32 %v246, 4294967288
          %v252 = vlaneseq
          %v253 = vshrl.u32 %v252, 7
          %v254 = vsub.s32 %v251, %v253
          %v255 = vrot.slane %v218, %v254
          %vm256 = vcmask 130112
          %v257 = vsel %vm256, %v255, %v250
          %v258 = vadd.s32 %v246, 4294967280
          %v259 = vlaneseq
          %v260 = vshrl.u32 %v259, 7
          %v261 = vsub.s32 %v258, %v260
          %v262 = vrot.slane %v221, %v261
          %vm263 = vcmask 195712
          %v264 = vsel %vm263, %v262, %v257
          %v265 = vadd.s32 %v246, 4294967272
          %v266 = vlaneseq
          %v267 = vshrl.u32 %v266, 7
          %v268 = vsub.s32 %v265, %v267
          %v269 = vrot.slane %v224, %v268
          %vm270 = vcmask 261312
          %v271 = vsel %vm270, %v269, %v264
          %vm273 = vcmask 253952
          %274 = vst.msk [vmem:[#allocation2] sm:$0x1] %vm273, %v271
          %v279 = vlaneseq
          %v280 = vshrl.u32 %v279, 7
          %v281 = vsub.s32 %v246, %v280
          %v282 = vrot.slane %v227, %v281
          %v283 = vlaneseq
          %v284 = vshrl.u32 %v283, 7
          %v285 = vsub.s32 %v251, %v284
          %v286 = vrot.slane %v230, %v285
          %v287 = vsel %vm256, %v286, %v282
          %v288 = vlaneseq
          %v289 = vshrl.u32 %v288, 7
          %v290 = vsub.s32 %v258, %v289
          %v291 = vrot.slane %v233, %v290
          %v292 = vsel %vm263, %v291, %v287
          %v293 = vlaneseq
          %v294 = vshrl.u32 %v293, 7
          %v295 = vsub.s32 %v265, %v294
          %v296 = vrot.slane %v236, %v295
          %v297 = vsel %vm270, %v296, %v292
          %299 = vst.msk [vmem:[#allocation2 + $0x1] sm:$0x1] %vm273, %v297
        $region40: #{tpu_custom_call.1} parent=31 // pred_fallthru
          _
        %p300 = scmp.gt.s32.totalorder %s25, 0
        // Predicated region
        $region41: #{tpu_custom_call.1} parent=31 // pred_check
          %p301 = pneg %p300
        $region42: #{tpu_custom_call.1} parent=31 // pred_check_branch
          %303 = sbr.rel (%p301) target = $region44
        $region43: #{tpu_custom_call.1} parent=31 // pred_region
          %v304 = vld [vmem:[#allocation2] sm:$0x1]
          %v309 = vlaneseq
          %v310 = vand.u32 %v309, 127
          %v311 = vlaneseq
          %v312 = vshrl.u32 %v311, 7
          %v313 = vsub.s32 %v310, %v312
          %v314 = vrot.slane %v215, %v313
          %v315 = vadd.s32 %v310, 4294967288
          %v316 = vlaneseq
          %v317 = vshrl.u32 %v316, 7
          %v318 = vsub.s32 %v315, %v317
          %v319 = vrot.slane %v218, %v318
          %vm320 = vcmask 130112
          %v321 = vsel %vm320, %v319, %v314
          %v322 = vadd.s32 %v310, 4294967280
          %v323 = vlaneseq
          %v324 = vshrl.u32 %v323, 7
          %v325 = vsub.s32 %v322, %v324
          %v326 = vrot.slane %v221, %v325
          %vm327 = vcmask 195712
          %v328 = vsel %vm327, %v326, %v321
          %v329 = vadd.s32 %v310, 4294967272
          %v330 = vlaneseq
          %v331 = vshrl.u32 %v330, 7
          %v332 = vsub.s32 %v329, %v331
          %v333 = vrot.slane %v224, %v332
          %vm334 = vcmask 261312
          %v335 = vsel %vm334, %v333, %v328
          %v337 = vadd.f32 %v304, %v335
          %vm338 = vcmask 253952
          %339 = vst.msk [vmem:[#allocation2] sm:$0x1] %vm338, %v337
          %v340 = vld [vmem:[#allocation2 + $0x1] sm:$0x1]
          %v345 = vlaneseq
          %v346 = vshrl.u32 %v345, 7
          %v347 = vsub.s32 %v310, %v346
          %v348 = vrot.slane %v227, %v347
          %v349 = vlaneseq
          %v350 = vshrl.u32 %v349, 7
          %v351 = vsub.s32 %v315, %v350
          %v352 = vrot.slane %v230, %v351
          %v353 = vsel %vm320, %v352, %v348
          %v354 = vlaneseq
          %v355 = vshrl.u32 %v354, 7
          %v356 = vsub.s32 %v322, %v355
          %v357 = vrot.slane %v233, %v356
          %v358 = vsel %vm327, %v357, %v353
          %v359 = vlaneseq
          %v360 = vshrl.u32 %v359, 7
          %v361 = vsub.s32 %v329, %v360
          %v362 = vrot.slane %v236, %v361
          %v363 = vsel %vm334, %v362, %v358
          %v365 = vmax.f32 %v340, %v363
          %366 = vst.msk [vmem:[#allocation2 + $0x1] sm:$0x1] %vm338, %v365
        $region44: #{tpu_custom_call.1} parent=31 // pred_fallthru
          _
        // Predicated region
        $region45: #{tpu_custom_call.1} parent=31 // pred_check
          %p367 = pneg %p237
        $region46: #{tpu_custom_call.1} parent=31 // pred_check_branch
          %369 = sbr.rel (%p367) target = $region48
        $region47: #{tpu_custom_call.1} parent=31 // pred_region
          %v370 = vld [vmem:[#allocation2] sm:$0x1]
          %v371 = vmul.f32 %v370, 0.00390625
          %vm372 = vcmask 253952
          %373 = vst.msk [vmem:[#allocation2] sm:$0x1] %vm372, %v371
          %v374 = vld [vmem:[#allocation2] sm:$0x3]
          %v375 = vld [vmem:[%s1] sm:$0x3]
          %vm376 = vcmask 261120
          %v378 = vsel %vm376, %v374, 0
          %v381 = vsel %vm376, %v375, 0
          %383 = vmatprep.subr.mxu0 0.0
          %384 = vmatpush1.xpose.msra.mxu0 0.0
          %385 = vmatprep.subr.mxu0 0.0
          %386 = vmatpush1.xpose.msra.mxu0 0.0
          %387 = vmatprep.subr.mxu0 0.0
          %388 = vmatpush1.xpose.msra.mxu0 0.0
          %389 = vmatprep.subr.mxu0 0.0
          %390 = vmatpush1.xpose.msra.mxu0 0.0
          %391 = vmatprep.subr.mxu0 0.0
          %392 = vmatpush1.xpose.msra.mxu0 0.0
          %393 = vmatprep.subr.mxu0 0.0
          %394 = vmatpush1.xpose.msra.mxu0 0.0
          %395 = vmatprep.subr.mxu0 0.0
          %396 = vmatpush1.xpose.msra.mxu0 0.0
          %397 = vmatprep.subr.mxu0 0.0
          %398 = vmatpush1.xpose.msra.mxu0 0.0
          %399 = vmatprep.subr.mxu0 0.0
          %400 = vmatpush1.xpose.msra.mxu0 0.0
          %401 = vmatprep.subr.mxu0 0.0
          %402 = vmatpush1.xpose.msra.mxu0 0.0
          %403 = vmatprep.subr.mxu0 0.0
          %404 = vmatpush1.xpose.msra.mxu0 0.0
          %405 = vmatprep.subr.mxu0 0.0
          %406 = vmatpush1.xpose.msra.mxu0 0.0
          %407 = vmatprep.subr.mxu0 0.0
          %408 = vmatpush1.xpose.msra.mxu0 0.0
          %409 = vmatprep.subr.mxu0 0.0
          %410 = vmatpush1.xpose.msra.mxu0 0.0
          %411 = vmatprep.subr.mxu0 0.0
          %412 = vmatpush1.xpose.msra.mxu0 0.0
          %413 = vmatprep.subr.mxu0 0.0
          %414 = vmatpush1.xpose.msra.mxu0 %v381
          %415 = vmatprep.subr.mxu0 0.0
          %416 = vmatpush2.xpose.msra.mxu0 0.0
          %417 = vmatprep.subr.mxu0 0.0
          %418 = vmatpush2.xpose.msra.mxu0 0.0
          %419 = vmatprep.subr.mxu0 0.0
          %420 = vmatpush2.xpose.msra.mxu0 0.0
          %421 = vmatprep.subr.mxu0 0.0
          %422 = vmatpush2.xpose.msra.mxu0 0.0
          %423 = vmatprep.subr.mxu0 0.0
          %424 = vmatpush2.xpose.msra.mxu0 0.0
          %425 = vmatprep.subr.mxu0 0.0
          %426 = vmatpush2.xpose.msra.mxu0 0.0
          %427 = vmatprep.subr.mxu0 0.0
          %428 = vmatpush2.xpose.msra.mxu0 0.0
          %429 = vmatprep.subr.mxu0 0.0
          %430 = vmatpush2.xpose.msra.mxu0 0.0
          %431 = vmatprep.subr.mxu0 0.0
          %432 = vmatpush2.xpose.msra.mxu0 0.0
          %433 = vmatprep.subr.mxu0 0.0
          %434 = vmatpush2.xpose.msra.mxu0 0.0
          %435 = vmatprep.subr.mxu0 0.0
          %436 = vmatpush2.xpose.msra.mxu0 0.0
          %437 = vmatprep.subr.mxu0 0.0
          %438 = vmatpush2.xpose.msra.mxu0 0.0
          %439 = vmatprep.subr.mxu0 0.0
          %440 = vmatpush2.xpose.msra.mxu0 0.0
          %441 = vmatprep.subr.mxu0 0.0
          %442 = vmatpush2.xpose.msra.mxu0 0.0
          %443 = vmatprep.subr.mxu0 0.0
          %444 = vmatpush2.xpose.msra.mxu0 0.0
          %445 = vmatprep.subr.mxu0 0.0
          %446 = vmatpush2.xpose.msra.mxu0 0.0
          %447 = vmatprep.mubr.f32.mxu0 0.0
          %448 = vmatmul.mubr.f32.gmra.mxu0 %v378
          %v449 = vpop.f32.mrf.mxu0
          %v450 = vadd.f32 0.0, %v449
          %v451 = vpop.f32.mrf.mxu0
          %452 = vdwg.mxu0
          %v453 = vmax.f32 %v450, 0.0
          %v454 = vld [vmem:[%s2] sm:$0xff]
          %v455 = vld [vmem:[%s2 + $0x8] sm:$0xff]
          %v456 = vld [vmem:[%s2 + $0x10] sm:$0xff]
          %v457 = vld [vmem:[%s2 + $0x18] sm:$0xff]
          %vm458 = vcmask 15360
          %v460 = vsel %vm458, %v453, 0
          %v463 = vsel %vm458, %v454, 0
          %v466 = vsel %vm458, %v455, 0
          %v469 = vsel %vm458, %v456, 0
          %v472 = vsel %vm458, %v457, 0
          %474 = vmatprep.subr.mxu0 0.0
          %475 = vmatpush1.xpose.msra.mxu0 0.0
          %476 = vmatprep.subr.mxu0 0.0
          %477 = vmatpush1.xpose.msra.mxu0 0.0
          %478 = vmatprep.subr.mxu0 0.0
          %479 = vmatpush1.xpose.msra.mxu0 0.0
          %480 = vmatprep.subr.mxu0 0.0
          %481 = vmatpush1.xpose.msra.mxu0 0.0
          %482 = vmatprep.subr.mxu0 0.0
          %483 = vmatpush1.xpose.msra.mxu0 0.0
          %484 = vmatprep.subr.mxu0 0.0
          %485 = vmatpush1.xpose.msra.mxu0 0.0
          %486 = vmatprep.subr.mxu0 0.0
          %487 = vmatpush1.xpose.msra.mxu0 0.0
          %488 = vmatprep.subr.mxu0 0.0
          %489 = vmatpush1.xpose.msra.mxu0 0.0
          %490 = vmatprep.subr.mxu0 0.0
          %491 = vmatpush1.xpose.msra.mxu0 0.0
          %492 = vmatprep.subr.mxu0 0.0
          %493 = vmatpush1.xpose.msra.mxu0 0.0
          %494 = vmatprep.subr.mxu0 0.0
          %495 = vmatpush1.xpose.msra.mxu0 0.0
          %496 = vmatprep.subr.mxu0 0.0
          %497 = vmatpush1.xpose.msra.mxu0 0.0
          %498 = vmatprep.subr.mxu0 0.0
          %499 = vmatpush1.xpose.msra.mxu0 %v472
          %500 = vmatprep.subr.mxu0 0.0
          %501 = vmatpush1.xpose.msra.mxu0 %v469
          %502 = vmatprep.subr.mxu0 0.0
          %503 = vmatpush1.xpose.msra.mxu0 %v466
          %504 = vmatprep.subr.mxu0 0.0
          %505 = vmatpush1.xpose.msra.mxu0 %v463
          %506 = vmatprep.subr.mxu0 0.0
          %507 = vmatpush2.xpose.msra.mxu0 0.0
          %508 = vmatprep.subr.mxu0 0.0
          %509 = vmatpush2.xpose.msra.mxu0 0.0
          %510 = vmatprep.subr.mxu0 0.0
          %511 = vmatpush2.xpose.msra.mxu0 0.0
          %512 = vmatprep.subr.mxu0 0.0
          %513 = vmatpush2.xpose.msra.mxu0 0.0
          %514 = vmatprep.subr.mxu0 0.0
          %515 = vmatpush2.xpose.msra.mxu0 0.0
          %516 = vmatprep.subr.mxu0 0.0
          %517 = vmatpush2.xpose.msra.mxu0 0.0
          %518 = vmatprep.subr.mxu0 0.0
          %519 = vmatpush2.xpose.msra.mxu0 0.0
          %520 = vmatprep.subr.mxu0 0.0
          %521 = vmatpush2.xpose.msra.mxu0 0.0
          %522 = vmatprep.subr.mxu0 0.0
          %523 = vmatpush2.xpose.msra.mxu0 0.0
          %524 = vmatprep.subr.mxu0 0.0
          %525 = vmatpush2.xpose.msra.mxu0 0.0
          %526 = vmatprep.subr.mxu0 0.0
          %527 = vmatpush2.xpose.msra.mxu0 0.0
          %528 = vmatprep.subr.mxu0 0.0
          %529 = vmatpush2.xpose.msra.mxu0 0.0
          %530 = vmatprep.subr.mxu0 0.0
          %531 = vmatpush2.xpose.msra.mxu0 0.0
          %532 = vmatprep.subr.mxu0 0.0
          %533 = vmatpush2.xpose.msra.mxu0 0.0
          %534 = vmatprep.subr.mxu0 0.0
          %535 = vmatpush2.xpose.msra.mxu0 0.0
          %536 = vmatprep.subr.mxu0 0.0
          %537 = vmatpush2.xpose.msra.mxu0 0.0
          %538 = vmatprep.mubr.f32.mxu0 0.0
          %539 = vmatmul.mubr.f32.gmra.mxu0 %v460
          %v540 = vpop.f32.mrf.mxu0
          %v541 = vadd.f32 0.0, %v540
          %v542 = vpop.f32.mrf.mxu0
          %543 = vdwg.mxu0
          %v545 = vrot.slane %v541, 1
          %v547 = vadd.f32 %v541, %v545
          %v548 = vxor.u32 %v547, 2147483648
          %v549 = vmul.f32 %v548, 1.442695
          %v550 = vpow.pop %v549
          %v551 = vadd.f32 %v550, 1.0
          %v552 = vrcp.pop %v551
          %v553 = vmul.f32 1.0, %v552
          %554 = vst.msk [vmem:[%s203] sm:$0x1] %vm372, %v553
        $region48: #{tpu_custom_call.1} parent=31 // pred_fallthru
          _
        %s555 = sand.u32 %s110, 1
        %s556 = scalar_lea.sflag [#allocation5], %s555
        %s557 = sand.u32 %s110, 1
        %s558 = scalar_lea.vmem [#allocation6], %s557
        // Predicated region
        $region49: #{tpu_custom_call.1} parent=31 // pred_check
          %p559 = pneg %p120
        $region50: #{tpu_custom_call.1} parent=31 // pred_check_branch
          %561 = sbr.rel (%p559) target = $region52
        $region51: #{tpu_custom_call.1} parent=31 // pred_region
          %s563 = ssub.s32 16, 16
          %564 = vsyncadd %s556, %s563
          %s565 = smul.addr %s24, 16
          %s566 = scalar_lea.hbm %s3, %s565
          %s568 = sshll.u32 %s558, 4
          %s569 = int_to_ptr.vmem [resolvable:$true] %s568
          %571 = dma.vmem_to_hbm [thread:$0]  %s569, 16, %s566, %s556
        $region52: #{tpu_custom_call.1} parent=31 // pred_fallthru
          _
      $region32: #{tpu_custom_call.1} parent=5 // pred_fallthru
        _
      %p572 = scmp.le.s32.totalorder 2, %s15
      // Predicated region
      $region53: #{tpu_custom_call.1} parent=5 // pred_check
        %p573 = pneg %p572
      $region54: #{tpu_custom_call.1} parent=5 // pred_check_branch
        %575 = sbr.rel (%p573) target = $region56
      $region55: #{tpu_custom_call.1} parent=5 // pred_region
        %s576 = ssub.s32 %s15, 2
        // Predicated region
        $region57: #{tpu_custom_call.1} parent=55 // pred_check
          %p577 = pneg %p126
        $region58: #{tpu_custom_call.1} parent=55 // pred_check_branch
          %579 = sbr.rel (%p577) target = $region60
        $region59: #{tpu_custom_call.1} parent=55 // pred_region
          %s580 = sand.u32 %s111, 1
          %s581 = scalar_lea.sflag [#allocation5], %s580
          %s582 = sand.u32 %s111, 1
          %s583 = scalar_lea.vmem [#allocation6], %s582
          %584 = dma.done %s581, 16
        $region60: #{tpu_custom_call.1} parent=55 // pred_fallthru
          _
      $region56: #{tpu_custom_call.1} parent=5 // pred_fallthru
        _
    $region6: #{tpu_custom_call.1} parent=1 // loop_footer
      %s19 = sadd.s32 1, %s15
    $region7: #{tpu_custom_call.1} parent=1 // loop_footer_branch
      %14 = sbr.rel target = $region3
    $region8: #{tpu_custom_call.1} parent=1 // loop_exit
      _
    %585 = vsyncpa [#allocation4], 1
    %s586 = scalar_lea.sflag [#allocation4], 1
    %587 = vsyncpa %s586, 1
    %588 = vsyncpa [#allocation5], 1
    %s589 = scalar_lea.sflag [#allocation5], 1
    %590 = vsyncpa %s589, 1

</llo_original>
